<compile_context>
chip_gen: v5e
topology: v5e:2x2
jax: 0.10.0
libtpu: 0.0.40
codegen_flags: <defaults>
</compile_context>

<pallas_src>
import functools

import jax
import jax.numpy as jnp
from jax import lax
from jax.experimental import pallas as pl
from jax.experimental.pallas import tpu as pltpu

LANE = 128
BF16 = jnp.bfloat16


def _round_up(v, m):
    return (v + m - 1) // m * m


def _pad2d(a, rows, cols, dtype):
    out = jnp.zeros((rows, cols), dtype)
    return out.at[: a.shape[0], : a.shape[1]].set(a.astype(dtype))


def _vmem_budgets():
    """(fused_path_guard_bytes, vmem_limit_bytes) from physical VMEM size."""
    cap = 128 * 2**20
    try:
        cap = int(getattr(pltpu.get_tpu_info(), "vmem_capacity_bytes", cap))
    except Exception:
        pass
    if cap >= 96 * 2**20:                 # v5e / v6e: 128 MiB physical
        return 96 * 2**20, 110 * 2**20
    # v7x-class: 64 MiB physical; leave headroom for compiler internal scratch.
    limit = max(24 * 2**20, min(52 * 2**20, cap - 12 * 2**20))
    guard = max(16 * 2**20, min(40 * 2**20, limit - 12 * 2**20))
    return guard, limit


# ----------------------- fused whole-VMEM kernel (small graphs) ---------------

def _fused_gcn_kernel(a_ref, x_ref, w_in_ref, b_in_ref, w_conv_ref, b_conv_ref,
                      w_out_ref, b_out_ref, *out_refs, num_layers, emit_latent):
    cdt = x_ref.dtype                      # bf16 MXU operand dtype
    a = a_ref[...]                         # A_hat resident across layers

    h32 = jnp.maximum(
        jnp.dot(x_ref[...], w_in_ref[...], preferred_element_type=jnp.float32)
        + b_in_ref[...], 0.0)
    h = h32.astype(cdt)                    # keep h bf16 between layers

    for l in range(num_layers):
        hw = jnp.dot(h, w_conv_ref[l],
                     preferred_element_type=jnp.float32).astype(cdt)
        h32 = jnp.maximum(
            jnp.dot(a, hw, preferred_element_type=jnp.float32)
            + b_conv_ref[l], 0.0)
        h = h32.astype(cdt)

    logits = jnp.dot(h, w_out_ref[...], preferred_element_type=jnp.float32)
    out_refs[0][...] = (logits + b_out_ref[...]).astype(out_refs[0].dtype)
    if emit_latent:
        out_refs[1][...] = h32.astype(out_refs[1].dtype)


def _fused_vmem_estimate(np_, fin, hp, op, num_layers, return_latent):
    b = np_ * np_ * 2 + np_ * fin * 2                     # A_hat, x (bf16)
    b += fin * hp * 2 + num_layers * hp * hp * 2 + hp * op * 2   # weights
    b += (num_layers + 1) * hp * 4 + op * 4               # biases (f32)
    b += np_ * op * 4 + (np_ * hp * 4 if return_latent else 0)   # outputs
    b += np_ * hp * (4 + 2 + 2)                           # live y/h/hw
    return b


def _fused_gcn(a_p, x_p, wp, return_latent, vmem_limit):
    np_ = a_p.shape[0]
    fin = x_p.shape[1]
    hp = wp["w_in"].shape[1]
    op = wp["w_out"].shape[1]
    L = len(wp["w_convs"])

    w_conv = jnp.stack(wp["w_convs"])
    b_conv = jnp.stack(wp["b_convs"])
    inputs = (a_p, x_p, wp["w_in"], wp["b_in"], w_conv, b_conv,
              wp["w_out"], wp["b_out"])

    flops = (2 * np_ * fin * hp
             + L * (2 * np_ * hp * hp + 2 * np_ * np_ * hp)
             + 2 * np_ * hp * op)
    hbm_bytes = sum(int(v.size) * v.dtype.itemsize for v in inputs)
    hbm_bytes += np_ * op * 4 + (np_ * hp * 4 if return_latent else 0)
    cost = pl.CostEstimate(flops=flops, transcendentals=0,
                           bytes_accessed=hbm_bytes)

    vspec = pl.BlockSpec(memory_space=pltpu.MemorySpace.VMEM)
    if return_latent:
        out_shape = (jax.ShapeDtypeStruct((np_, op), jnp.float32),
                     jax.ShapeDtypeStruct((np_, hp), jnp.float32))
        out_specs = (vspec, vspec)
    else:
        out_shape = jax.ShapeDtypeStruct((np_, op), jnp.float32)
        out_specs = vspec

    res = pl.pallas_call(
        functools.partial(_fused_gcn_kernel, num_layers=L,
                          emit_latent=return_latent),
        out_shape=out_shape,
        in_specs=[vspec] * len(inputs),
        out_specs=out_specs,
        compiler_params=pltpu.CompilerParams(vmem_limit_bytes=vmem_limit),
        cost_estimate=cost,
    )(*inputs)
    if return_latent:
        return res
    return res, None


# ------------------------- row-tiled path (large graphs) ----------------------

def _lin_in_kernel(x_ref, w_in_ref, b_in_ref, w1_ref, hw_ref):
    h = jnp.dot(x_ref[...], w_in_ref[...], preferred_element_type=jnp.float32)
    h = jnp.maximum(h + b_in_ref[...], 0.0).astype(x_ref.dtype)
    hw_ref[...] = jnp.dot(h, w1_ref[...],
                          preferred_element_type=jnp.float32).astype(hw_ref.dtype)


def _conv_mid_kernel(a_ref, hw_ref, b_ref, w_next_ref, hw_next_ref):
    y = jnp.dot(a_ref[...], hw_ref[...], preferred_element_type=jnp.float32)
    h = jnp.maximum(y + b_ref[...], 0.0).astype(a_ref.dtype)
    hw_next_ref[...] = jnp.dot(h, w_next_ref[...],
                               preferred_element_type=jnp.float32).astype(
                                   hw_next_ref.dtype)


def _conv_last_kernel(a_ref, hw_ref, b_ref, w_out_ref, b_out_ref,
                      *out_refs, emit_latent):
    y = jnp.dot(a_ref[...], hw_ref[...], preferred_element_type=jnp.float32)
    h32 = jnp.maximum(y + b_ref[...], 0.0)
    logits = jnp.dot(h32.astype(a_ref.dtype), w_out_ref[...],
                     preferred_element_type=jnp.float32)
    out_refs[0][...] = (logits + b_out_ref[...]).astype(out_refs[0].dtype)
    if emit_latent:
        out_refs[1][...] = h32.astype(out_refs[1].dtype)


def _pick_tm(np_, hp, vmem_limit):
    # 2 pipeline buffers of the (tm, N_p) bf16 A_hat row tile plus the output
    # double-buffers must stay within ~half the scoped budget (the other half
    # holds the resident hw / weights / compiler scratch).
    budget = vmem_limit // 2
    for tm in (512, 256, 128):
        if np_ % tm == 0 and (2 * tm * np_ * 2 + 2 * tm * hp * 6) <= budget:
            return tm
    # TODO(synk): for graphs where even a 128-row A tile overflows VMEM, also
    # tile the contraction (column) axis of A_hat and accumulate over it.
    return 128


def _tiled_gcn(a_p, x_p, wp, return_latent, vmem_limit):
    np_ = a_p.shape[0]
    fin = x_p.shape[1]
    hp = wp["w_in"].shape[1]
    op = wp["w_out"].shape[1]
    L = len(wp["w_convs"])
    assert L >= 1

    tm = _pick_tm(np_, hp, vmem_limit)
    grid = (np_ // tm,)
    cparams = pltpu.CompilerParams(dimension_semantics=("parallel",),
                                   vmem_limit_bytes=vmem_limit)
    row = lambda i: (i, 0)     # row tile of nodes
    full = lambda i: (0, 0)    # whole array, resident across grid steps

    # hw_1 = relu(x @ W_in + b_in) @ W_conv[0]
    hw = pl.pallas_call(
        _lin_in_kernel,
        grid=grid,
        in_specs=[pl.BlockSpec((tm, fin), row),
                  pl.BlockSpec((fin, hp), full),
                  pl.BlockSpec((1, hp), full),
                  pl.BlockSpec((hp, hp), full)],
        out_specs=pl.BlockSpec((tm, hp), row),
        out_shape=jax.ShapeDtypeStruct((np_, hp), BF16),
        compiler_params=cparams,
    )(x_p, wp["w_in"], wp["b_in"], wp["w_convs"][0])

    # middle conv layers: hw_{l+2} = relu(A @ hw_{l+1} + b_l) @ W_{l+1}
    for l in range(L - 1):
        hw = pl.pallas_call(
            _conv_mid_kernel,
            grid=grid,
            in_specs=[pl.BlockSpec((tm, np_), row),      # A_hat row tile (HBM->VMEM)
                      pl.BlockSpec((np_, hp), full),     # hw resident
                      pl.BlockSpec((1, hp), full),
                      pl.BlockSpec((hp, hp), full)],
            out_specs=pl.BlockSpec((tm, hp), row),
            out_shape=jax.ShapeDtypeStruct((np_, hp), BF16),
            compiler_params=cparams,
        )(a_p, hw, wp["b_convs"][l], wp["w_convs"][l + 1])

    # last conv layer fused with lin_out (and optional latent)
    if return_latent:
        out_shape = (jax.ShapeDtypeStruct((np_, op), jnp.float32),
                     jax.ShapeDtypeStruct((np_, hp), jnp.float32))
        out_specs = (pl.BlockSpec((tm, op), row), pl.BlockSpec((tm, hp), row))
    else:
        out_shape = jax.ShapeDtypeStruct((np_, op), jnp.float32)
        out_specs = pl.BlockSpec((tm, op), row)

    res = pl.pallas_call(
        functools.partial(_conv_last_kernel, emit_latent=return_latent),
        grid=grid,
        in_specs=[pl.BlockSpec((tm, np_), row),
                  pl.BlockSpec((np_, hp), full),
                  pl.BlockSpec((1, hp), full),
                  pl.BlockSpec((hp, op), full),
                  pl.BlockSpec((1, op), full)],
        out_specs=out_specs,
        out_shape=out_shape,
        compiler_params=cparams,
    )(a_p, hw, wp["b_convs"][L - 1], wp["w_out"], wp["b_out"])
    if return_latent:
        return res
    return res, None


# ------------------------------ glue (JAX) -----------------------------------

def normalized_adjacency_padded(edge_index, num_nodes, n_pad):
    """Padded bf16 D^-1/2 (A + I) D^-1/2 built without an f32 dense adjacency.

    Mirrors PyG gcn_norm semantics used before: duplicate edges scatter-add,
    explicit self-loops are replaced by weight-1 self-loops for every node.
    """
    src, dst = edge_index[0], edge_index[1]
    w = jnp.where(src != dst, 1.0, 0.0).astype(jnp.float32)
    deg = jnp.zeros((num_nodes,), jnp.float32).at[dst].add(w) + 1.0  # +self loop
    dinv = lax.rsqrt(deg)
    vals = (dinv[dst] * w * dinv[src]).astype(BF16)
    a = jnp.zeros((n_pad, n_pad), BF16)
    a = a.at[dst, src].add(vals)
    idx = jnp.arange(num_nodes)
    a = a.at[idx, idx].add((dinv * dinv).astype(BF16))
    return a


def init_params(key, in_channels, hidden_channels, out_channels, num_layers):
    """Deterministic synthetic parameters (torch-Linear-like uniform init)."""
    params = {}
    k = key

    def lin_init(k, fin, fout):
        k1, k2 = jax.random.split(k)
        bound = 1.0 / jnp.sqrt(jnp.float32(fin))
        w = jax.random.uniform(k1, (fin, fout), jnp.float32, -bound, bound)
        b = jax.random.uniform(k2, (fout,), jnp.float32, -bound, bound)
        return w, b

    k, sub = jax.random.split(k)
    params["lin_in"] = lin_init(sub, in_channels, hidden_channels)
    params["convs"] = []
    for _ in range(num_layers):
        k, sub = jax.random.split(k)
        params["convs"].append(lin_init(sub, hidden_channels, hidden_channels))
    k, sub = jax.random.split(k)
    params["lin_out"] = lin_init(sub, hidden_channels, out_channels)
    return params


def gcn_forward(params, x, edge_index, return_latent=False, force_tiled=False):
    """Mirrors GCN.forward with activation = ReLU."""
    n, in_c = x.shape
    hid = params["lin_in"][0].shape[1]
    out_c = params["lin_out"][0].shape[1]
    num_layers = len(params["convs"])
    assert num_layers >= 1

    np_ = _round_up(n, LANE)
    fin = _round_up(in_c, LANE)
    hp = _round_up(hid, LANE)
    op = _round_up(out_c, LANE)

    a_p = normalized_adjacency_padded(edge_index, n, np_)    # bf16, padded
    x_p = _pad2d(x, np_, fin, BF16)

    w_in, b_in = params["lin_in"]
    w_out, b_out = params["lin_out"]
    wp = {
        "w_in": _pad2d(w_in, fin, hp, BF16),
        "b_in": _pad2d(b_in.reshape(1, -1), 1, hp, jnp.float32),
        "w_convs": [_pad2d(w, hp, hp, BF16) for (w, _) in params["convs"]],
        "b_convs": [_pad2d(b.reshape(1, -1), 1, hp, jnp.float32)
                    for (_, b) in params["convs"]],
        "w_out": _pad2d(w_out, hp, op, BF16),
        "b_out": _pad2d(b_out.reshape(1, -1), 1, op, jnp.float32),
    }

    guard, limit = _vmem_budgets()
    est = _fused_vmem_estimate(np_, fin, hp, op, num_layers, return_latent)
    if (not force_tiled) and est <= guard:
        logits_p, latent_p = _fused_gcn(a_p, x_p, wp, return_latent, limit)
    else:
        logits_p, latent_p = _tiled_gcn(a_p, x_p, wp, return_latent, limit)

    logits = logits_p[:n, :out_c]
    if return_latent:
        return logits, latent_p[:n, :hid]
    return logits


# --------------------------------- main ---------------------------------------

if __name__ == "__main__":
    key = jax.random.PRNGKey(0)

    N = 8            # nodes
    E = 16           # edges
    IN_C = 4
    HID_C = 32
    OUT_C = 4
    NUM_LAYERS = 2   # number of GCNConv layers

    k_x, k_e, k_p = jax.random.split(key, 3)
    x = jax.random.normal(k_x, (N, IN_C), jnp.float32)
    edge_index = jax.random.randint(k_e, (2, E), 0, N, dtype=jnp.int32)
    params = init_params(k_p, IN_C, HID_C, OUT_C, NUM_LAYERS)

    fwd = jax.jit(functools.partial(gcn_forward, return_latent=True))
    logits, latent = fwd(params, x, edge_index)
    jax.block_until_ready((logits, latent))
    assert logits.shape == (N, OUT_C)
    assert latent.shape == (N, HID_C)

    # Exercise the row-tiled large-graph path and cross-check it against the
    # fused whole-VMEM path on a larger graph (identical bf16 math).
    N2, E2 = 1024, 4096
    k_x2, k_e2 = jax.random.split(jax.random.PRNGKey(1))
    x2 = jax.random.normal(k_x2, (N2, IN_C), jnp.float32)
    ei2 = jax.random.randint(k_e2, (2, E2), 0, N2, dtype=jnp.int32)

    fwd_tiled = jax.jit(functools.partial(gcn_forward, return_latent=True,
                                          force_tiled=True))
    lt, la = fwd_tiled(params, x2, ei2)
    lf, lb = fwd(params, x2, ei2)
    jax.block_until_ready((lt, la, lf, lb))
    assert lt.shape == (N2, OUT_C) and la.shape == (N2, HID_C)
    assert jnp.allclose(lt, lf, atol=3e-2, rtol=3e-2)
    assert jnp.allclose(la, lb, atol=3e-2, rtol=3e-2)

    print("KERNEL_OK")
</pallas_src>

<mosaic_0001>
module attributes {stable_mosaic.version = 11 : i64} {
  func.func @_fused_gcn_kernel(%arg0: memref<128x128xbf16, #tpu.memory_space<vmem>>, %arg1: memref<128x128xbf16, #tpu.memory_space<vmem>>, %arg2: memref<128x128xbf16, #tpu.memory_space<vmem>>, %arg3: memref<1x128xf32, #tpu.memory_space<vmem>>, %arg4: memref<2x128x128xbf16, #tpu.memory_space<vmem>>, %arg5: memref<2x1x128xf32, #tpu.memory_space<vmem>>, %arg6: memref<128x128xbf16, #tpu.memory_space<vmem>>, %arg7: memref<1x128xf32, #tpu.memory_space<vmem>>, %arg8: memref<128x128xf32, #tpu.memory_space<vmem>>, %arg9: memref<128x128xf32, #tpu.memory_space<vmem>>) attributes {dimension_semantics = [], scalar_prefetch = 0 : i64, scratch_operands = 0 : i64, tpu.core_type = #tpu.core_type<tc>} {
    %c0 = arith.constant 0 : index
    %c0_0 = arith.constant 0 : index
    %0 = vector.load %arg0[%c0, %c0_0] : memref<128x128xbf16, #tpu.memory_space<vmem>>, vector<128x128xbf16>
    %c0_1 = arith.constant 0 : index
    %c0_2 = arith.constant 0 : index
    %1 = vector.load %arg1[%c0_1, %c0_2] : memref<128x128xbf16, #tpu.memory_space<vmem>>, vector<128x128xbf16>
    %c0_3 = arith.constant 0 : index
    %c0_4 = arith.constant 0 : index
    %2 = vector.load %arg2[%c0_3, %c0_4] : memref<128x128xbf16, #tpu.memory_space<vmem>>, vector<128x128xbf16>
    %cst = arith.constant dense<0.000000e+00> : vector<128x128xf32>
    %3 = tpu.matmul %1, %2, %cst {dimension_numbers = #tpu.dot_dimension_numbers<[1], [0], [0], [1], [0, 0, 1, 1], [], []>} : vector<128x128xbf16>, vector<128x128xbf16>, vector<128x128xf32> -> vector<128x128xf32>
    %c0_5 = arith.constant 0 : index
    %c0_6 = arith.constant 0 : index
    %4 = vector.load %arg3[%c0_5, %c0_6] : memref<1x128xf32, #tpu.memory_space<vmem>>, vector<1x128xf32>
    %5 = vector.broadcast %4 : vector<1x128xf32> to vector<128x128xf32>
    %6 = arith.addf %3, %5 : vector<128x128xf32>
    %cst_7 = arith.constant 0.000000e+00 : f32
    %7 = vector.broadcast %cst_7 : f32 to vector<128x128xf32>
    %8 = arith.maximumf %6, %7 : vector<128x128xf32>
    %9 = arith.truncf %8 : vector<128x128xf32> to vector<128x128xbf16>
    %c0_8 = arith.constant 0 : index
    %c0_9 = arith.constant 0 : index
    %c0_10 = arith.constant 0 : index
    %10 = vector.load %arg4[%c0_8, %c0_9, %c0_10] : memref<2x128x128xbf16, #tpu.memory_space<vmem>>, vector<1x128x128xbf16>
    %11 = vector.shape_cast %10 : vector<1x128x128xbf16> to vector<128x128xbf16>
    %cst_11 = arith.constant dense<0.000000e+00> : vector<128x128xf32>
    %12 = tpu.matmul %9, %11, %cst_11 {dimension_numbers = #tpu.dot_dimension_numbers<[1], [0], [0], [1], [0, 0, 1, 1], [], []>} : vector<128x128xbf16>, vector<128x128xbf16>, vector<128x128xf32> -> vector<128x128xf32>
    %13 = arith.truncf %12 : vector<128x128xf32> to vector<128x128xbf16>
    %cst_12 = arith.constant dense<0.000000e+00> : vector<128x128xf32>
    %14 = tpu.matmul %0, %13, %cst_12 {dimension_numbers = #tpu.dot_dimension_numbers<[1], [0], [0], [1], [0, 0, 1, 1], [], []>} : vector<128x128xbf16>, vector<128x128xbf16>, vector<128x128xf32> -> vector<128x128xf32>
    %c0_13 = arith.constant 0 : index
    %c0_14 = arith.constant 0 : index
    %c0_15 = arith.constant 0 : index
    %15 = vector.load %arg5[%c0_13, %c0_14, %c0_15] : memref<2x1x128xf32, #tpu.memory_space<vmem>>, vector<1x1x128xf32>
    %16 = vector.shape_cast %15 : vector<1x1x128xf32> to vector<1x128xf32>
    %17 = vector.broadcast %16 : vector<1x128xf32> to vector<128x128xf32>
    %18 = arith.addf %14, %17 : vector<128x128xf32>
    %cst_16 = arith.constant 0.000000e+00 : f32
    %19 = vector.broadcast %cst_16 : f32 to vector<128x128xf32>
    %20 = arith.maximumf %18, %19 : vector<128x128xf32>
    %21 = arith.truncf %20 : vector<128x128xf32> to vector<128x128xbf16>
    %c1 = arith.constant 1 : index
    %c0_17 = arith.constant 0 : index
    %c0_18 = arith.constant 0 : index
    %22 = vector.load %arg4[%c1, %c0_17, %c0_18] : memref<2x128x128xbf16, #tpu.memory_space<vmem>>, vector<1x128x128xbf16>
    %23 = vector.shape_cast %22 : vector<1x128x128xbf16> to vector<128x128xbf16>
    %cst_19 = arith.constant dense<0.000000e+00> : vector<128x128xf32>
    %24 = tpu.matmul %21, %23, %cst_19 {dimension_numbers = #tpu.dot_dimension_numbers<[1], [0], [0], [1], [0, 0, 1, 1], [], []>} : vector<128x128xbf16>, vector<128x128xbf16>, vector<128x128xf32> -> vector<128x128xf32>
    %25 = arith.truncf %24 : vector<128x128xf32> to vector<128x128xbf16>
    %cst_20 = arith.constant dense<0.000000e+00> : vector<128x128xf32>
    %26 = tpu.matmul %0, %25, %cst_20 {dimension_numbers = #tpu.dot_dimension_numbers<[1], [0], [0], [1], [0, 0, 1, 1], [], []>} : vector<128x128xbf16>, vector<128x128xbf16>, vector<128x128xf32> -> vector<128x128xf32>
    %c1_21 = arith.constant 1 : index
    %c0_22 = arith.constant 0 : index
    %c0_23 = arith.constant 0 : index
    %27 = vector.load %arg5[%c1_21, %c0_22, %c0_23] : memref<2x1x128xf32, #tpu.memory_space<vmem>>, vector<1x1x128xf32>
    %28 = vector.shape_cast %27 : vector<1x1x128xf32> to vector<1x128xf32>
    %29 = vector.broadcast %28 : vector<1x128xf32> to vector<128x128xf32>
    %30 = arith.addf %26, %29 : vector<128x128xf32>
    %cst_24 = arith.constant 0.000000e+00 : f32
    %31 = vector.broadcast %cst_24 : f32 to vector<128x128xf32>
    %32 = arith.maximumf %30, %31 : vector<128x128xf32>
    %33 = arith.truncf %32 : vector<128x128xf32> to vector<128x128xbf16>
    %c0_25 = arith.constant 0 : index
    %c0_26 = arith.constant 0 : index
    %34 = vector.load %arg6[%c0_25, %c0_26] : memref<128x128xbf16, #tpu.memory_space<vmem>>, vector<128x128xbf16>
    %cst_27 = arith.constant dense<0.000000e+00> : vector<128x128xf32>
    %35 = tpu.matmul %33, %34, %cst_27 {dimension_numbers = #tpu.dot_dimension_numbers<[1], [0], [0], [1], [0, 0, 1, 1], [], []>} : vector<128x128xbf16>, vector<128x128xbf16>, vector<128x128xf32> -> vector<128x128xf32>
    %c0_28 = arith.constant 0 : index
    %c0_29 = arith.constant 0 : index
    %36 = vector.load %arg7[%c0_28, %c0_29] : memref<1x128xf32, #tpu.memory_space<vmem>>, vector<1x128xf32>
    %37 = vector.broadcast %36 : vector<1x128xf32> to vector<128x128xf32>
    %38 = arith.addf %35, %37 : vector<128x128xf32>
    %c0_30 = arith.constant 0 : index
    %c0_31 = arith.constant 0 : index
    %39 = vector.load %arg8[%c0_30, %c0_31] : memref<128x128xf32, #tpu.memory_space<vmem>>, vector<128x128xf32>
    tpu.vector_store %arg8[%c0_30, %c0_31], %38 {strides = array<i32>} : memref<128x128xf32, #tpu.memory_space<vmem>>, vector<128x128xf32>,
    %c0_32 = arith.constant 0 : index
    %c0_33 = arith.constant 0 : index
    %40 = vector.load %arg9[%c0_32, %c0_33] : memref<128x128xf32, #tpu.memory_space<vmem>>, vector<128x128xf32>
    tpu.vector_store %arg9[%c0_32, %c0_33], %32 {strides = array<i32>} : memref<128x128xf32, #tpu.memory_space<vmem>>, vector<128x128xf32>,
    return
  }
}

</mosaic_0001>

<llo_original>
// kernel: gcn_forward.1
$region0: #{gcn_forward.1}
  #allocation0 [shape = 'u32[]', space=smem, size = 0x4, offset = 0x4, fixed_abs, tag = 'smem constant byte address 0x4 - core index']
  #allocation1 [shape = 'u32[72,128]{1,0:T(1,128)}', space=vmem, size = 0x9000, scoped, tag = 'internal scratch']
  %s0 = inlined_call_operand.vmem [shape: bf16[128,128], index: 0, kind: input, shape index: {}]
  %s1 = inlined_call_operand.vmem [shape: bf16[128,128], index: 1, kind: input, shape index: {}]
  %s2 = inlined_call_operand.vmem [shape: bf16[128,128], index: 2, kind: input, shape index: {}]
  %s3 = inlined_call_operand.vmem [shape: f32[1,128], index: 3, kind: input, shape index: {}]
  %s4 = inlined_call_operand.vmem [shape: bf16[2,128,128], index: 4, kind: input, shape index: {}]
  %s5 = inlined_call_operand.vmem [shape: f32[2,1,128], index: 5, kind: input, shape index: {}]
  %s6 = inlined_call_operand.vmem [shape: bf16[128,128], index: 6, kind: input, shape index: {}]
  %s7 = inlined_call_operand.vmem [shape: f32[1,128], index: 7, kind: input, shape index: {}]
  %s8 = inlined_call_operand.vmem [shape: f32[128,128], index: 8, kind: output, shape index: {0}]
  %s9 = inlined_call_operand.vmem [shape: f32[128,128], index: 9, kind: output, shape index: {1}]
  %10 = xla_tuple %s8, %s9
  %s11 = sld [smem:[#allocation0]]
  $region50: #{gcn_forward.1} parent=0
    _
  %s13 = ssub.s32 1, %s11
  %s14 = scalar_select 0, %s13, %s11
  // Predicated region
  $region2: #{gcn_forward.1} parent=0 // pred_check
    _
  $region3: #{gcn_forward.1} parent=0 // pred_check_branch
    %16 = sbr.rel (0) target = $region5
  $region4: #{gcn_forward.1} parent=0 // pred_region
    _
  $region5: #{gcn_forward.1} parent=0 // pred_fallthru
    _
  // Predicated region
  $region6: #{gcn_forward.1} parent=0 // pred_check
    _
  $region7: #{gcn_forward.1} parent=0 // pred_check_branch
    %18 = sbr.rel (0) target = $region9
  $region8: #{gcn_forward.1} parent=0 // pred_region
    _
  $region9: #{gcn_forward.1} parent=0 // pred_fallthru
    _
  // Predicated region
  $region10: #{gcn_forward.1} parent=0 // pred_check
    _
  $region11: #{gcn_forward.1} parent=0 // pred_check_branch
    %20 = sbr.rel (0) target = $region13
  $region12: #{gcn_forward.1} parent=0 // pred_region
    _
  $region13: #{gcn_forward.1} parent=0 // pred_fallthru
    _
  // Predicated region
  $region14: #{gcn_forward.1} parent=0 // pred_check
    _
  $region15: #{gcn_forward.1} parent=0 // pred_check_branch
    %22 = sbr.rel (0) target = $region17
  $region16: #{gcn_forward.1} parent=0 // pred_region
    _
  $region17: #{gcn_forward.1} parent=0 // pred_fallthru
    _
  // Predicated region
  $region18: #{gcn_forward.1} parent=0 // pred_check
    _
  $region19: #{gcn_forward.1} parent=0 // pred_check_branch
    %24 = sbr.rel (0) target = $region21
  $region20: #{gcn_forward.1} parent=0 // pred_region
    _
  $region21: #{gcn_forward.1} parent=0 // pred_fallthru
    _
  // Predicated region
  $region22: #{gcn_forward.1} parent=0 // pred_check
    _
  $region23: #{gcn_forward.1} parent=0 // pred_check_branch
    %26 = sbr.rel (0) target = $region25
  $region24: #{gcn_forward.1} parent=0 // pred_region
    _
  $region25: #{gcn_forward.1} parent=0 // pred_fallthru
    _
  // Predicated region
  $region26: #{gcn_forward.1} parent=0 // pred_check
    _
  $region27: #{gcn_forward.1} parent=0 // pred_check_branch
    %28 = sbr.rel (0) target = $region29
  $region28: #{gcn_forward.1} parent=0 // pred_region
    _
  $region29: #{gcn_forward.1} parent=0 // pred_fallthru
    _
  // Predicated region
  $region30: #{gcn_forward.1} parent=0 // pred_check
    _
  $region31: #{gcn_forward.1} parent=0 // pred_check_branch
    %30 = sbr.rel (0) target = $region33
  $region32: #{gcn_forward.1} parent=0 // pred_region
    _
  $region33: #{gcn_forward.1} parent=0 // pred_fallthru
    _
  %v31 = vld [vmem:[%s0] sm:$0xf]
  %v32 = vld [vmem:[%s0 + $0x4] sm:$0xf]
  %v33 = vld [vmem:[%s0 + $0x8] sm:$0xf]
  %v34 = vld [vmem:[%s0 + $0xc] sm:$0xf]
  %v35 = vld [vmem:[%s0 + $0x10] sm:$0xf]
  %v36 = vld [vmem:[%s0 + $0x14] sm:$0xf]
  %v37 = vld [vmem:[%s0 + $0x18] sm:$0xf]
  %v38 = vld [vmem:[%s0 + $0x1c] sm:$0xf]
  %v39 = vld [vmem:[%s0 + $0x20] sm:$0xf]
  %v40 = vld [vmem:[%s0 + $0x24] sm:$0xf]
  %v41 = vld [vmem:[%s0 + $0x28] sm:$0xf]
  %v42 = vld [vmem:[%s0 + $0x2c] sm:$0xf]
  %v43 = vld [vmem:[%s0 + $0x30] sm:$0xf]
  %v44 = vld [vmem:[%s0 + $0x34] sm:$0xf]
  %v45 = vld [vmem:[%s0 + $0x38] sm:$0xf]
  %v46 = vld [vmem:[%s0 + $0x3c] sm:$0xf]
  %v47 = vld [vmem:[%s1] sm:$0xf]
  %v48 = vld [vmem:[%s1 + $0x4] sm:$0xf]
  %v49 = vld [vmem:[%s1 + $0x8] sm:$0xf]
  %v50 = vld [vmem:[%s1 + $0xc] sm:$0xf]
  %v51 = vld [vmem:[%s1 + $0x10] sm:$0xf]
  %v52 = vld [vmem:[%s1 + $0x14] sm:$0xf]
  %v53 = vld [vmem:[%s1 + $0x18] sm:$0xf]
  %v54 = vld [vmem:[%s1 + $0x1c] sm:$0xf]
  %v55 = vld [vmem:[%s1 + $0x20] sm:$0xf]
  %v56 = vld [vmem:[%s1 + $0x24] sm:$0xf]
  %v57 = vld [vmem:[%s1 + $0x28] sm:$0xf]
  %v58 = vld [vmem:[%s1 + $0x2c] sm:$0xf]
  %v59 = vld [vmem:[%s1 + $0x30] sm:$0xf]
  %v60 = vld [vmem:[%s1 + $0x34] sm:$0xf]
  %v61 = vld [vmem:[%s1 + $0x38] sm:$0xf]
  %v62 = vld [vmem:[%s1 + $0x3c] sm:$0xf]
  %v63 = vld [vmem:[%s2] sm:$0xf]
  %v64 = vld [vmem:[%s2 + $0x4] sm:$0xf]
  %v65 = vld [vmem:[%s2 + $0x8] sm:$0xf]
  %v66 = vld [vmem:[%s2 + $0xc] sm:$0xf]
  %v67 = vld [vmem:[%s2 + $0x10] sm:$0xf]
  %v68 = vld [vmem:[%s2 + $0x14] sm:$0xf]
  %v69 = vld [vmem:[%s2 + $0x18] sm:$0xf]
  %v70 = vld [vmem:[%s2 + $0x1c] sm:$0xf]
  %v71 = vld [vmem:[%s2 + $0x20] sm:$0xf]
  %v72 = vld [vmem:[%s2 + $0x24] sm:$0xf]
  %v73 = vld [vmem:[%s2 + $0x28] sm:$0xf]
  %v74 = vld [vmem:[%s2 + $0x2c] sm:$0xf]
  %v75 = vld [vmem:[%s2 + $0x30] sm:$0xf]
  %v76 = vld [vmem:[%s2 + $0x34] sm:$0xf]
  %v77 = vld [vmem:[%s2 + $0x38] sm:$0xf]
  %v78 = vld [vmem:[%s2 + $0x3c] sm:$0xf]
  %v79 = vld [vmem:[%s3] sm:$0x1]
  %v81 = vperm.slane %v79, 0
  %v99 = vunpack.c.l.b16 %v47
  %v100 = vunpack.c.l.b16 %v48
  %v101 = vunpack.c.l.b16 %v49
  %v102 = vunpack.c.l.b16 %v50
  %v103 = vunpack.c.l.b16 %v51
  %v104 = vunpack.c.l.b16 %v52
  %v105 = vunpack.c.l.b16 %v53
  %v106 = vunpack.c.l.b16 %v54
  %v107 = vunpack.c.l.b16 %v55
  %v108 = vunpack.c.l.b16 %v56
  %v109 = vunpack.c.l.b16 %v57
  %v110 = vunpack.c.l.b16 %v58
  %v111 = vunpack.c.l.b16 %v59
  %v112 = vunpack.c.l.b16 %v60
  %v113 = vunpack.c.l.b16 %v61
  %v114 = vunpack.c.l.b16 %v62
  %v115 = vpack.c.b16 %v100, %v99
  %v116 = vpack.c.b16 %v102, %v101
  %v117 = vpack.c.b16 %v104, %v103
  %v118 = vpack.c.b16 %v106, %v105
  %v119 = vpack.c.b16 %v108, %v107
  %v120 = vpack.c.b16 %v110, %v109
  %v121 = vpack.c.b16 %v112, %v111
  %v122 = vpack.c.b16 %v114, %v113
  %v147 = vunpack.c.l.b16 %v63
  %v148 = vunpack.c.l.b16 %v64
  %v149 = vunpack.c.l.b16 %v65
  %v150 = vunpack.c.l.b16 %v66
  %v151 = vunpack.c.l.b16 %v67
  %v152 = vunpack.c.l.b16 %v68
  %v153 = vunpack.c.l.b16 %v69
  %v154 = vunpack.c.l.b16 %v70
  %v155 = vunpack.c.l.b16 %v71
  %v156 = vunpack.c.l.b16 %v72
  %v157 = vunpack.c.l.b16 %v73
  %v158 = vunpack.c.l.b16 %v74
  %v159 = vunpack.c.l.b16 %v75
  %v160 = vunpack.c.l.b16 %v76
  %v161 = vunpack.c.l.b16 %v77
  %v162 = vunpack.c.l.b16 %v78
  %v163 = vpack.c.b16 %v148, %v147
  %v164 = vpack.c.b16 %v150, %v149
  %v165 = vpack.c.b16 %v152, %v151
  %v166 = vpack.c.b16 %v154, %v153
  %v167 = vpack.c.b16 %v156, %v155
  %v168 = vpack.c.b16 %v158, %v157
  %v169 = vpack.c.b16 %v160, %v159
  %v170 = vpack.c.b16 %v162, %v161
  %179 = vmatpush.bf16.msra.mxu0 %v170
  %180 = vmatpush.bf16.msra.mxu0 %v169
  %181 = vmatpush.bf16.msra.mxu0 %v168
  %182 = vmatpush.bf16.msra.mxu0 %v167
  %183 = vmatpush.bf16.msra.mxu0 %v166
  %184 = vmatpush.bf16.msra.mxu0 %v165
  %185 = vmatpush.bf16.msra.mxu0 %v164
  %186 = vmatpush.bf16.msra.mxu0 %v163
  %187 = vmatmul.bf16.gmra.mxu0 %v115
  %v188 = vpop.f32.mrf.mxu0
  %v189 = vadd.f32 %v81, %v188
  %v190 = vpop.f32.mrf.mxu0
  %v191 = vadd.f32 %v81, %v190
  %192 = vmatmul.bf16.gmra.mxu0 %v116
  %v193 = vpop.f32.mrf.mxu0
  %v194 = vadd.f32 %v81, %v193
  %v195 = vpop.f32.mrf.mxu0
  %v196 = vadd.f32 %v81, %v195
  %197 = vmatmul.bf16.gmra.mxu0 %v117
  %v198 = vpop.f32.mrf.mxu0
  %v199 = vadd.f32 %v81, %v198
  %v200 = vpop.f32.mrf.mxu0
  %v201 = vadd.f32 %v81, %v200
  %202 = vmatmul.bf16.gmra.mxu0 %v118
  %v203 = vpop.f32.mrf.mxu0
  %v204 = vadd.f32 %v81, %v203
  %v205 = vpop.f32.mrf.mxu0
  %v206 = vadd.f32 %v81, %v205
  %207 = vmatmul.bf16.gmra.mxu0 %v119
  %v208 = vpop.f32.mrf.mxu0
  %v209 = vadd.f32 %v81, %v208
  %v210 = vpop.f32.mrf.mxu0
  %v211 = vadd.f32 %v81, %v210
  %212 = vmatmul.bf16.gmra.mxu0 %v120
  %v213 = vpop.f32.mrf.mxu0
  %v214 = vadd.f32 %v81, %v213
  %v215 = vpop.f32.mrf.mxu0
  %v216 = vadd.f32 %v81, %v215
  %217 = vmatmul.bf16.gmra.mxu0 %v121
  %v218 = vpop.f32.mrf.mxu0
  %v219 = vadd.f32 %v81, %v218
  %v220 = vpop.f32.mrf.mxu0
  %v221 = vadd.f32 %v81, %v220
  %222 = vmatmul.bf16.gmra.mxu0 %v122
  %v223 = vpop.f32.mrf.mxu0
  %v224 = vadd.f32 %v81, %v223
  %v225 = vpop.f32.mrf.mxu0
  %v226 = vadd.f32 %v81, %v225
  %227 = vdwg.mxu0
  %v228 = vmax.f32 %v189, 0.0
  %v229 = vmax.f32 %v191, 0.0
  %v230 = vmax.f32 %v194, 0.0
  %v231 = vmax.f32 %v196, 0.0
  %v232 = vmax.f32 %v199, 0.0
  %v233 = vmax.f32 %v201, 0.0
  %v234 = vmax.f32 %v204, 0.0
  %v235 = vmax.f32 %v206, 0.0
  %v236 = vmax.f32 %v209, 0.0
  %v237 = vmax.f32 %v211, 0.0
  %v238 = vmax.f32 %v214, 0.0
  %v239 = vmax.f32 %v216, 0.0
  %v240 = vmax.f32 %v219, 0.0
  %v241 = vmax.f32 %v221, 0.0
  %v242 = vmax.f32 %v224, 0.0
  %v243 = vmax.f32 %v226, 0.0
  %v244 = vpack.c.bf16 %v229, %v228
  %v245 = vpack.c.bf16 %v231, %v230
  %v246 = vpack.c.bf16 %v233, %v232
  %v247 = vpack.c.bf16 %v235, %v234
  %v248 = vpack.c.bf16 %v237, %v236
  %v249 = vpack.c.bf16 %v239, %v238
  %v250 = vpack.c.bf16 %v241, %v240
  %v251 = vpack.c.bf16 %v243, %v242
  %v252 = vld [vmem:[%s4] sm:$0xf]
  %v253 = vld [vmem:[%s4 + $0x4] sm:$0xf]
  %v254 = vld [vmem:[%s4 + $0x8] sm:$0xf]
  %v255 = vld [vmem:[%s4 + $0xc] sm:$0xf]
  %v256 = vld [vmem:[%s4 + $0x10] sm:$0xf]
  %v257 = vld [vmem:[%s4 + $0x14] sm:$0xf]
  %v258 = vld [vmem:[%s4 + $0x18] sm:$0xf]
  %v259 = vld [vmem:[%s4 + $0x1c] sm:$0xf]
  %v260 = vld [vmem:[%s4 + $0x20] sm:$0xf]
  %v261 = vld [vmem:[%s4 + $0x24] sm:$0xf]
  %v262 = vld [vmem:[%s4 + $0x28] sm:$0xf]
  %v263 = vld [vmem:[%s4 + $0x2c] sm:$0xf]
  %v264 = vld [vmem:[%s4 + $0x30] sm:$0xf]
  %v265 = vld [vmem:[%s4 + $0x34] sm:$0xf]
  %v266 = vld [vmem:[%s4 + $0x38] sm:$0xf]
  %v267 = vld [vmem:[%s4 + $0x3c] sm:$0xf]
  %v284 = vunpack.c.l.b16 %v252
  %v285 = vunpack.c.l.b16 %v253
  %v286 = vunpack.c.l.b16 %v254
  %v287 = vunpack.c.l.b16 %v255
  %v288 = vunpack.c.l.b16 %v256
  %v289 = vunpack.c.l.b16 %v257
  %v290 = vunpack.c.l.b16 %v258
  %v291 = vunpack.c.l.b16 %v259
  %v292 = vunpack.c.l.b16 %v260
  %v293 = vunpack.c.l.b16 %v261
  %v294 = vunpack.c.l.b16 %v262
  %v295 = vunpack.c.l.b16 %v263
  %v296 = vunpack.c.l.b16 %v264
  %v297 = vunpack.c.l.b16 %v265
  %v298 = vunpack.c.l.b16 %v266
  %v299 = vunpack.c.l.b16 %v267
  %v300 = vpack.c.b16 %v285, %v284
  %v301 = vpack.c.b16 %v287, %v286
  %v302 = vpack.c.b16 %v289, %v288
  %v303 = vpack.c.b16 %v291, %v290
  %v304 = vpack.c.b16 %v293, %v292
  %v305 = vpack.c.b16 %v295, %v294
  %v306 = vpack.c.b16 %v297, %v296
  %v307 = vpack.c.b16 %v299, %v298
  %316 = vmatpush.bf16.msra.mxu0 %v307
  %317 = vmatpush.bf16.msra.mxu0 %v306
  %318 = vmatpush.bf16.msra.mxu0 %v305
  %319 = vmatpush.bf16.msra.mxu0 %v304
  %320 = vmatpush.bf16.msra.mxu0 %v303
  %321 = vmatpush.bf16.msra.mxu0 %v302
  %322 = vmatpush.bf16.msra.mxu0 %v301
  %323 = vmatpush.bf16.msra.mxu0 %v300
  %324 = vmatmul.bf16.gmra.mxu0 %v244
  %v325 = vpop.f32.mrf.mxu0
  %v326 = vadd.f32 0.0, %v325
  %v327 = vpop.f32.mrf.mxu0
  %v328 = vadd.f32 0.0, %v327
  %329 = vmatmul.bf16.gmra.mxu0 %v245
  %v330 = vpop.f32.mrf.mxu0
  %v331 = vadd.f32 0.0, %v330
  %v332 = vpop.f32.mrf.mxu0
  %v333 = vadd.f32 0.0, %v332
  %334 = vmatmul.bf16.gmra.mxu0 %v246
  %v335 = vpop.f32.mrf.mxu0
  %v336 = vadd.f32 0.0, %v335
  %v337 = vpop.f32.mrf.mxu0
  %v338 = vadd.f32 0.0, %v337
  %339 = vmatmul.bf16.gmra.mxu0 %v247
  %v340 = vpop.f32.mrf.mxu0
  %v341 = vadd.f32 0.0, %v340
  %v342 = vpop.f32.mrf.mxu0
  %v343 = vadd.f32 0.0, %v342
  %344 = vmatmul.bf16.gmra.mxu0 %v248
  %v345 = vpop.f32.mrf.mxu0
  %v346 = vadd.f32 0.0, %v345
  %v347 = vpop.f32.mrf.mxu0
  %v348 = vadd.f32 0.0, %v347
  %349 = vmatmul.bf16.gmra.mxu0 %v249
  %v350 = vpop.f32.mrf.mxu0
  %v351 = vadd.f32 0.0, %v350
  %v352 = vpop.f32.mrf.mxu0
  %v353 = vadd.f32 0.0, %v352
  %354 = vmatmul.bf16.gmra.mxu0 %v250
  %v355 = vpop.f32.mrf.mxu0
  %v356 = vadd.f32 0.0, %v355
  %v357 = vpop.f32.mrf.mxu0
  %v358 = vadd.f32 0.0, %v357
  %359 = vmatmul.bf16.gmra.mxu0 %v251
  %v360 = vpop.f32.mrf.mxu0
  %v361 = vadd.f32 0.0, %v360
  %v362 = vpop.f32.mrf.mxu0
  %v363 = vadd.f32 0.0, %v362
  %364 = vdwg.mxu0
  %v365 = vpack.c.bf16 %v328, %v326
  %v366 = vpack.c.bf16 %v333, %v331
  %v367 = vpack.c.bf16 %v338, %v336
  %v368 = vpack.c.bf16 %v343, %v341
  %v369 = vpack.c.bf16 %v348, %v346
  %v370 = vpack.c.bf16 %v353, %v351
  %v371 = vpack.c.bf16 %v358, %v356
  %v372 = vpack.c.bf16 %v363, %v361
  %v373 = vld [vmem:[%s5] sm:$0x1]
  %v375 = vperm.slane %v373, 0
  %v393 = vunpack.c.l.b16 %v31
  %v394 = vunpack.c.l.b16 %v32
  %v395 = vunpack.c.l.b16 %v33
  %v396 = vunpack.c.l.b16 %v34
  %v397 = vunpack.c.l.b16 %v35
  %v398 = vunpack.c.l.b16 %v36
  %v399 = vunpack.c.l.b16 %v37
  %v400 = vunpack.c.l.b16 %v38
  %v401 = vunpack.c.l.b16 %v39
  %v402 = vunpack.c.l.b16 %v40
  %v403 = vunpack.c.l.b16 %v41
  %v404 = vunpack.c.l.b16 %v42
  %v405 = vunpack.c.l.b16 %v43
  %v406 = vunpack.c.l.b16 %v44
  %v407 = vunpack.c.l.b16 %v45
  %v408 = vunpack.c.l.b16 %v46
  %v409 = vpack.c.b16 %v394, %v393
  %v410 = vpack.c.b16 %v396, %v395
  %v411 = vpack.c.b16 %v398, %v397
  %v412 = vpack.c.b16 %v400, %v399
  %v413 = vpack.c.b16 %v402, %v401
  %v414 = vpack.c.b16 %v404, %v403
  %v415 = vpack.c.b16 %v406, %v405
  %v416 = vpack.c.b16 %v408, %v407
  %425 = vmatpush.bf16.msra.mxu0 %v372
  %426 = vmatpush.bf16.msra.mxu0 %v371
  %427 = vmatpush.bf16.msra.mxu0 %v370
  %428 = vmatpush.bf16.msra.mxu0 %v369
  %429 = vmatpush.bf16.msra.mxu0 %v368
  %430 = vmatpush.bf16.msra.mxu0 %v367
  %431 = vmatpush.bf16.msra.mxu0 %v366
  %432 = vmatpush.bf16.msra.mxu0 %v365
  %433 = vmatmul.bf16.gmra.mxu0 %v409
  %v434 = vpop.f32.mrf.mxu0
  %v435 = vadd.f32 %v375, %v434
  %v436 = vpop.f32.mrf.mxu0
  %v437 = vadd.f32 %v375, %v436
  %438 = vmatmul.bf16.gmra.mxu0 %v410
  %v439 = vpop.f32.mrf.mxu0
  %v440 = vadd.f32 %v375, %v439
  %v441 = vpop.f32.mrf.mxu0
  %v442 = vadd.f32 %v375, %v441
  %443 = vmatmul.bf16.gmra.mxu0 %v411
  %v444 = vpop.f32.mrf.mxu0
  %v445 = vadd.f32 %v375, %v444
  %v446 = vpop.f32.mrf.mxu0
  %v447 = vadd.f32 %v375, %v446
  %448 = vmatmul.bf16.gmra.mxu0 %v412
  %v449 = vpop.f32.mrf.mxu0
  %v450 = vadd.f32 %v375, %v449
  %v451 = vpop.f32.mrf.mxu0
  %v452 = vadd.f32 %v375, %v451
  %453 = vmatmul.bf16.gmra.mxu0 %v413
  %v454 = vpop.f32.mrf.mxu0
  %v455 = vadd.f32 %v375, %v454
  %v456 = vpop.f32.mrf.mxu0
  %v457 = vadd.f32 %v375, %v456
  %458 = vmatmul.bf16.gmra.mxu0 %v414
  %v459 = vpop.f32.mrf.mxu0
  %v460 = vadd.f32 %v375, %v459
  %v461 = vpop.f32.mrf.mxu0
  %v462 = vadd.f32 %v375, %v461
  %463 = vmatmul.bf16.gmra.mxu0 %v415
  %v464 = vpop.f32.mrf.mxu0
  %v465 = vadd.f32 %v375, %v464
  %v466 = vpop.f32.mrf.mxu0
  %v467 = vadd.f32 %v375, %v466
  %468 = vmatmul.bf16.gmra.mxu0 %v416
  %v469 = vpop.f32.mrf.mxu0
  %v470 = vadd.f32 %v375, %v469
  %v471 = vpop.f32.mrf.mxu0
  %v472 = vadd.f32 %v375, %v471
  %473 = vdwg.mxu0
  %v474 = vmax.f32 %v435, 0.0
  %v475 = vmax.f32 %v437, 0.0
  %v476 = vmax.f32 %v440, 0.0
  %v477 = vmax.f32 %v442, 0.0
  %v478 = vmax.f32 %v445, 0.0
  %v479 = vmax.f32 %v447, 0.0
  %v480 = vmax.f32 %v450, 0.0
  %v481 = vmax.f32 %v452, 0.0
  %v482 = vmax.f32 %v455, 0.0
  %v483 = vmax.f32 %v457, 0.0
  %v484 = vmax.f32 %v460, 0.0
  %v485 = vmax.f32 %v462, 0.0
  %v486 = vmax.f32 %v465, 0.0
  %v487 = vmax.f32 %v467, 0.0
  %v488 = vmax.f32 %v470, 0.0
  %v489 = vmax.f32 %v472, 0.0
  %v490 = vpack.c.bf16 %v475, %v474
  %v491 = vpack.c.bf16 %v477, %v476
  %v492 = vpack.c.bf16 %v479, %v478
  %v493 = vpack.c.bf16 %v481, %v480
  %v494 = vpack.c.bf16 %v483, %v482
  %v495 = vpack.c.bf16 %v485, %v484
  %v496 = vpack.c.bf16 %v487, %v486
  %v497 = vpack.c.bf16 %v489, %v488
  %s498 = scalar_lea.vmem %s4, 64
  %v499 = vld [vmem:[%s498] sm:$0xf]
  %v500 = vld [vmem:[%s498 + $0x4] sm:$0xf]
  %v501 = vld [vmem:[%s498 + $0x8] sm:$0xf]
  %v502 = vld [vmem:[%s498 + $0xc] sm:$0xf]
  %v503 = vld [vmem:[%s498 + $0x10] sm:$0xf]
  %v504 = vld [vmem:[%s498 + $0x14] sm:$0xf]
  %v505 = vld [vmem:[%s498 + $0x18] sm:$0xf]
  %v506 = vld [vmem:[%s498 + $0x1c] sm:$0xf]
  %v507 = vld [vmem:[%s498 + $0x20] sm:$0xf]
  %v508 = vld [vmem:[%s498 + $0x24] sm:$0xf]
  %v509 = vld [vmem:[%s498 + $0x28] sm:$0xf]
  %v510 = vld [vmem:[%s498 + $0x2c] sm:$0xf]
  %v511 = vld [vmem:[%s498 + $0x30] sm:$0xf]
  %v512 = vld [vmem:[%s498 + $0x34] sm:$0xf]
  %v513 = vld [vmem:[%s498 + $0x38] sm:$0xf]
  %v514 = vld [vmem:[%s498 + $0x3c] sm:$0xf]
  %v531 = vunpack.c.l.b16 %v499
  %v532 = vunpack.c.l.b16 %v500
  %v533 = vunpack.c.l.b16 %v501
  %v534 = vunpack.c.l.b16 %v502
  %v535 = vunpack.c.l.b16 %v503
  %v536 = vunpack.c.l.b16 %v504
  %v537 = vunpack.c.l.b16 %v505
  %v538 = vunpack.c.l.b16 %v506
  %v539 = vunpack.c.l.b16 %v507
  %v540 = vunpack.c.l.b16 %v508
  %v541 = vunpack.c.l.b16 %v509
  %v542 = vunpack.c.l.b16 %v510
  %v543 = vunpack.c.l.b16 %v511
  %v544 = vunpack.c.l.b16 %v512
  %v545 = vunpack.c.l.b16 %v513
  %v546 = vunpack.c.l.b16 %v514
  %v547 = vpack.c.b16 %v532, %v531
  %v548 = vpack.c.b16 %v534, %v533
  %v549 = vpack.c.b16 %v536, %v535
  %v550 = vpack.c.b16 %v538, %v537
  %v551 = vpack.c.b16 %v540, %v539
  %v552 = vpack.c.b16 %v542, %v541
  %v553 = vpack.c.b16 %v544, %v543
  %v554 = vpack.c.b16 %v546, %v545
  %563 = vmatpush.bf16.msra.mxu0 %v554
  %564 = vmatpush.bf16.msra.mxu0 %v553
  %565 = vmatpush.bf16.msra.mxu0 %v552
  %566 = vmatpush.bf16.msra.mxu0 %v551
  %567 = vmatpush.bf16.msra.mxu0 %v550
  %568 = vmatpush.bf16.msra.mxu0 %v549
  %569 = vmatpush.bf16.msra.mxu0 %v548
  %570 = vmatpush.bf16.msra.mxu0 %v547
  %571 = vmatmul.bf16.gmra.mxu0 %v490
  %v572 = vpop.f32.mrf.mxu0
  %v573 = vadd.f32 0.0, %v572
  %v574 = vpop.f32.mrf.mxu0
  %v575 = vadd.f32 0.0, %v574
  %576 = vmatmul.bf16.gmra.mxu0 %v491
  %v577 = vpop.f32.mrf.mxu0
  %v578 = vadd.f32 0.0, %v577
  %v579 = vpop.f32.mrf.mxu0
  %v580 = vadd.f32 0.0, %v579
  %581 = vmatmul.bf16.gmra.mxu0 %v492
  %v582 = vpop.f32.mrf.mxu0
  %v583 = vadd.f32 0.0, %v582
  %v584 = vpop.f32.mrf.mxu0
  %v585 = vadd.f32 0.0, %v584
  %586 = vmatmul.bf16.gmra.mxu0 %v493
  %v587 = vpop.f32.mrf.mxu0
  %v588 = vadd.f32 0.0, %v587
  %v589 = vpop.f32.mrf.mxu0
  %v590 = vadd.f32 0.0, %v589
  %591 = vmatmul.bf16.gmra.mxu0 %v494
  %v592 = vpop.f32.mrf.mxu0
  %v593 = vadd.f32 0.0, %v592
  %v594 = vpop.f32.mrf.mxu0
  %v595 = vadd.f32 0.0, %v594
  %596 = vmatmul.bf16.gmra.mxu0 %v495
  %v597 = vpop.f32.mrf.mxu0
  %v598 = vadd.f32 0.0, %v597
  %v599 = vpop.f32.mrf.mxu0
  %v600 = vadd.f32 0.0, %v599
  %601 = vmatmul.bf16.gmra.mxu0 %v496
  %v602 = vpop.f32.mrf.mxu0
  %v603 = vadd.f32 0.0, %v602
  %v604 = vpop.f32.mrf.mxu0
  %v605 = vadd.f32 0.0, %v604
  %606 = vmatmul.bf16.gmra.mxu0 %v497
  %v607 = vpop.f32.mrf.mxu0
  %v608 = vadd.f32 0.0, %v607
  %v609 = vpop.f32.mrf.mxu0
  %v610 = vadd.f32 0.0, %v609
  %611 = vdwg.mxu0
  %v612 = vpack.c.bf16 %v575, %v573
  %v613 = vpack.c.bf16 %v580, %v578
  %v614 = vpack.c.bf16 %v585, %v583
  %v615 = vpack.c.bf16 %v590, %v588
  %v616 = vpack.c.bf16 %v595, %v593
  %v617 = vpack.c.bf16 %v600, %v598
  %v618 = vpack.c.bf16 %v605, %v603
  %v619 = vpack.c.bf16 %v610, %v608
  %s620 = scalar_lea.vmem %s5, 1
  %v621 = vld [vmem:[%s620] sm:$0x1]
  %v623 = vperm.slane %v621, 0
  %625 = vmatpush.bf16.msra.mxu0 %v619
  %626 = vmatpush.bf16.msra.mxu0 %v618
  %627 = vmatpush.bf16.msra.mxu0 %v617
  %628 = vmatpush.bf16.msra.mxu0 %v616
  %629 = vmatpush.bf16.msra.mxu0 %v615
  %630 = vmatpush.bf16.msra.mxu0 %v614
  %631 = vmatpush.bf16.msra.mxu0 %v613
  %632 = vmatpush.bf16.msra.mxu0 %v612
  %633 = vmatmul.bf16.gmra.mxu0 %v409
  %v634 = vpop.f32.mrf.mxu0
  %v635 = vadd.f32 %v623, %v634
  %v636 = vpop.f32.mrf.mxu0
  %v637 = vadd.f32 %v623, %v636
  %638 = vmatmul.bf16.gmra.mxu0 %v410
  %v639 = vpop.f32.mrf.mxu0
  %v640 = vadd.f32 %v623, %v639
  %v641 = vpop.f32.mrf.mxu0
  %v642 = vadd.f32 %v623, %v641
  %643 = vmatmul.bf16.gmra.mxu0 %v411
  %v644 = vpop.f32.mrf.mxu0
  %v645 = vadd.f32 %v623, %v644
  %v646 = vpop.f32.mrf.mxu0
  %v647 = vadd.f32 %v623, %v646
  %648 = vmatmul.bf16.gmra.mxu0 %v412
  %v649 = vpop.f32.mrf.mxu0
  %v650 = vadd.f32 %v623, %v649
  %v651 = vpop.f32.mrf.mxu0
  %v652 = vadd.f32 %v623, %v651
  %653 = vmatmul.bf16.gmra.mxu0 %v413
  %v654 = vpop.f32.mrf.mxu0
  %v655 = vadd.f32 %v623, %v654
  %v656 = vpop.f32.mrf.mxu0
  %v657 = vadd.f32 %v623, %v656
  %658 = vmatmul.bf16.gmra.mxu0 %v414
  %v659 = vpop.f32.mrf.mxu0
  %v660 = vadd.f32 %v623, %v659
  %v661 = vpop.f32.mrf.mxu0
  %v662 = vadd.f32 %v623, %v661
  %663 = vmatmul.bf16.gmra.mxu0 %v415
  %v664 = vpop.f32.mrf.mxu0
  %v665 = vadd.f32 %v623, %v664
  %v666 = vpop.f32.mrf.mxu0
  %v667 = vadd.f32 %v623, %v666
  %668 = vmatmul.bf16.gmra.mxu0 %v416
  %v669 = vpop.f32.mrf.mxu0
  %v670 = vadd.f32 %v623, %v669
  %v671 = vpop.f32.mrf.mxu0
  %v672 = vadd.f32 %v623, %v671
  %673 = vdwg.mxu0
  %v674 = vmax.f32 %v635, 0.0
  %v675 = vmax.f32 %v637, 0.0
  %v676 = vmax.f32 %v640, 0.0
  %v677 = vmax.f32 %v642, 0.0
  %v678 = vmax.f32 %v645, 0.0
  %v679 = vmax.f32 %v647, 0.0
  %v680 = vmax.f32 %v650, 0.0
  %v681 = vmax.f32 %v652, 0.0
  %v682 = vmax.f32 %v655, 0.0
  %v683 = vmax.f32 %v657, 0.0
  %v684 = vmax.f32 %v660, 0.0
  %v685 = vmax.f32 %v662, 0.0
  %v686 = vmax.f32 %v665, 0.0
  %v687 = vmax.f32 %v667, 0.0
  %v688 = vmax.f32 %v670, 0.0
  %v689 = vmax.f32 %v672, 0.0
  %v690 = vpack.c.bf16 %v675, %v674
  %v691 = vpack.c.bf16 %v677, %v676
  %v692 = vpack.c.bf16 %v679, %v678
  %v693 = vpack.c.bf16 %v681, %v680
  %v694 = vpack.c.bf16 %v683, %v682
  %v695 = vpack.c.bf16 %v685, %v684
  %v696 = vpack.c.bf16 %v687, %v686
  %v697 = vpack.c.bf16 %v689, %v688
  %v698 = vld [vmem:[%s6] sm:$0xf]
  %v699 = vld [vmem:[%s6 + $0x4] sm:$0xf]
  %v700 = vld [vmem:[%s6 + $0x8] sm:$0xf]
  %v701 = vld [vmem:[%s6 + $0xc] sm:$0xf]
  %v702 = vld [vmem:[%s6 + $0x10] sm:$0xf]
  %v703 = vld [vmem:[%s6 + $0x14] sm:$0xf]
  %v704 = vld [vmem:[%s6 + $0x18] sm:$0xf]
  %v705 = vld [vmem:[%s6 + $0x1c] sm:$0xf]
  %v706 = vld [vmem:[%s6 + $0x20] sm:$0xf]
  %v707 = vld [vmem:[%s6 + $0x24] sm:$0xf]
  %v708 = vld [vmem:[%s6 + $0x28] sm:$0xf]
  %v709 = vld [vmem:[%s6 + $0x2c] sm:$0xf]
  %v710 = vld [vmem:[%s6 + $0x30] sm:$0xf]
  %v711 = vld [vmem:[%s6 + $0x34] sm:$0xf]
  %v712 = vld [vmem:[%s6 + $0x38] sm:$0xf]
  %v713 = vld [vmem:[%s6 + $0x3c] sm:$0xf]
  %v714 = vld [vmem:[%s7] sm:$0x1]
  %v716 = vperm.slane %v714, 0
  %v734 = vunpack.c.l.b16 %v698
  %v735 = vunpack.c.l.b16 %v699
  %v736 = vunpack.c.l.b16 %v700
  %v737 = vunpack.c.l.b16 %v701
  %v738 = vunpack.c.l.b16 %v702
  %v739 = vunpack.c.l.b16 %v703
  %v740 = vunpack.c.l.b16 %v704
  %v741 = vunpack.c.l.b16 %v705
  %v742 = vunpack.c.l.b16 %v706
  %v743 = vunpack.c.l.b16 %v707
  %v744 = vunpack.c.l.b16 %v708
  %v745 = vunpack.c.l.b16 %v709
  %v746 = vunpack.c.l.b16 %v710
  %v747 = vunpack.c.l.b16 %v711
  %v748 = vunpack.c.l.b16 %v712
  %v749 = vunpack.c.l.b16 %v713
  %v750 = vpack.c.b16 %v735, %v734
  %v751 = vpack.c.b16 %v737, %v736
  %v752 = vpack.c.b16 %v739, %v738
  %v753 = vpack.c.b16 %v741, %v740
  %v754 = vpack.c.b16 %v743, %v742
  %v755 = vpack.c.b16 %v745, %v744
  %v756 = vpack.c.b16 %v747, %v746
  %v757 = vpack.c.b16 %v749, %v748
  %766 = vmatpush.bf16.msra.mxu0 %v757
  %767 = vmatpush.bf16.msra.mxu0 %v756
  %768 = vmatpush.bf16.msra.mxu0 %v755
  %769 = vmatpush.bf16.msra.mxu0 %v754
  %770 = vmatpush.bf16.msra.mxu0 %v753
  %771 = vmatpush.bf16.msra.mxu0 %v752
  %772 = vmatpush.bf16.msra.mxu0 %v751
  %773 = vmatpush.bf16.msra.mxu0 %v750
  %774 = vmatmul.bf16.gmra.mxu0 %v690
  %v775 = vpop.f32.mrf.mxu0
  %v776 = vadd.f32 %v716, %v775
  %v777 = vpop.f32.mrf.mxu0
  %v778 = vadd.f32 %v716, %v777
  %779 = vmatmul.bf16.gmra.mxu0 %v691
  %v780 = vpop.f32.mrf.mxu0
  %v781 = vadd.f32 %v716, %v780
  %v782 = vpop.f32.mrf.mxu0
  %v783 = vadd.f32 %v716, %v782
  %784 = vmatmul.bf16.gmra.mxu0 %v692
  %v785 = vpop.f32.mrf.mxu0
  %v786 = vadd.f32 %v716, %v785
  %v787 = vpop.f32.mrf.mxu0
  %v788 = vadd.f32 %v716, %v787
  %789 = vmatmul.bf16.gmra.mxu0 %v693
  %v790 = vpop.f32.mrf.mxu0
  %v791 = vadd.f32 %v716, %v790
  %v792 = vpop.f32.mrf.mxu0
  %v793 = vadd.f32 %v716, %v792
  %794 = vmatmul.bf16.gmra.mxu0 %v694
  %v795 = vpop.f32.mrf.mxu0
  %v796 = vadd.f32 %v716, %v795
  %v797 = vpop.f32.mrf.mxu0
  %v798 = vadd.f32 %v716, %v797
  %799 = vmatmul.bf16.gmra.mxu0 %v695
  %v800 = vpop.f32.mrf.mxu0
  %v801 = vadd.f32 %v716, %v800
  %v802 = vpop.f32.mrf.mxu0
  %v803 = vadd.f32 %v716, %v802
  %804 = vmatmul.bf16.gmra.mxu0 %v696
  %v805 = vpop.f32.mrf.mxu0
  %v806 = vadd.f32 %v716, %v805
  %v807 = vpop.f32.mrf.mxu0
  %v808 = vadd.f32 %v716, %v807
  %809 = vmatmul.bf16.gmra.mxu0 %v697
  %v810 = vpop.f32.mrf.mxu0
  %v811 = vadd.f32 %v716, %v810
  %v812 = vpop.f32.mrf.mxu0
  %v813 = vadd.f32 %v716, %v812
  %814 = vdwg.mxu0
  %815 = vst [vmem:[%s8] sm:$0xff] %v776
  %816 = vst [vmem:[%s8 + $0x8] sm:$0xff] %v778
  %817 = vst [vmem:[%s8 + $0x10] sm:$0xff] %v781
  %818 = vst [vmem:[%s8 + $0x18] sm:$0xff] %v783
  %819 = vst [vmem:[%s8 + $0x20] sm:$0xff] %v786
  %820 = vst [vmem:[%s8 + $0x28] sm:$0xff] %v788
  %821 = vst [vmem:[%s8 + $0x30] sm:$0xff] %v791
  %822 = vst [vmem:[%s8 + $0x38] sm:$0xff] %v793
  %823 = vst [vmem:[%s8 + $0x40] sm:$0xff] %v796
  %824 = vst [vmem:[%s8 + $0x48] sm:$0xff] %v798
  %825 = vst [vmem:[%s8 + $0x50] sm:$0xff] %v801
  %826 = vst [vmem:[%s8 + $0x58] sm:$0xff] %v803
  %827 = vst [vmem:[%s8 + $0x60] sm:$0xff] %v806
  %828 = vst [vmem:[%s8 + $0x68] sm:$0xff] %v808
  %829 = vst [vmem:[%s8 + $0x70] sm:$0xff] %v811
  %830 = vst [vmem:[%s8 + $0x78] sm:$0xff] %v813
  %831 = vst [vmem:[%s9] sm:$0xff] %v674
  %832 = vst [vmem:[%s9 + $0x8] sm:$0xff] %v675
  %833 = vst [vmem:[%s9 + $0x10] sm:$0xff] %v676
  %834 = vst [vmem:[%s9 + $0x18] sm:$0xff] %v677
  %835 = vst [vmem:[%s9 + $0x20] sm:$0xff] %v678
  %836 = vst [vmem:[%s9 + $0x28] sm:$0xff] %v679
  %837 = vst [vmem:[%s9 + $0x30] sm:$0xff] %v680
  %838 = vst [vmem:[%s9 + $0x38] sm:$0xff] %v681
  %839 = vst [vmem:[%s9 + $0x40] sm:$0xff] %v682
  %840 = vst [vmem:[%s9 + $0x48] sm:$0xff] %v683
  %841 = vst [vmem:[%s9 + $0x50] sm:$0xff] %v684
  %842 = vst [vmem:[%s9 + $0x58] sm:$0xff] %v685
  %843 = vst [vmem:[%s9 + $0x60] sm:$0xff] %v686
  %844 = vst [vmem:[%s9 + $0x68] sm:$0xff] %v687
  %845 = vst [vmem:[%s9 + $0x70] sm:$0xff] %v688
  %846 = vst [vmem:[%s9 + $0x78] sm:$0xff] %v689
  // Predicated region
  $region34: #{gcn_forward.1} parent=0 // pred_check
    _
  $region35: #{gcn_forward.1} parent=0 // pred_check_branch
    %848 = sbr.rel (0) target = $region37
  $region36: #{gcn_forward.1} parent=0 // pred_region
    _
  $region37: #{gcn_forward.1} parent=0 // pred_fallthru
    _
  // Predicated region
  $region38: #{gcn_forward.1} parent=0 // pred_check
    _
  $region39: #{gcn_forward.1} parent=0 // pred_check_branch
    %850 = sbr.rel (0) target = $region41
  $region40: #{gcn_forward.1} parent=0 // pred_region
    _
  $region41: #{gcn_forward.1} parent=0 // pred_fallthru
    _
  // Predicated region
  $region42: #{gcn_forward.1} parent=0 // pred_check
    _
  $region43: #{gcn_forward.1} parent=0 // pred_check_branch
    %852 = sbr.rel (0) target = $region45
  $region44: #{gcn_forward.1} parent=0 // pred_region
    _
  $region45: #{gcn_forward.1} parent=0 // pred_fallthru
    _
  // Predicated region
  $region46: #{gcn_forward.1} parent=0 // pred_check
    _
  $region47: #{gcn_forward.1} parent=0 // pred_check_branch
    %854 = sbr.rel (0) target = $region49
  $region48: #{gcn_forward.1} parent=0 // pred_region
    _
  $region49: #{gcn_forward.1} parent=0 // pred_fallthru
    _

</llo_original>
